<compile_context>
chip_gen: v5e
topology: v5e:2x2
jax: 0.10.0
libtpu: 0.0.40
codegen_flags: <defaults>
</compile_context>

<pallas_src>
import math

import jax
import jax.numpy as jnp
from jax.experimental import pallas as pl
from jax.experimental.pallas import tpu as pltpu


def _round_up(v, m):
    return -(-v // m) * m


# ---------------------------------------------------------------------------
# Exact k-th smallest via counting binary search (no sort, no top_k).
# ---------------------------------------------------------------------------
def _kth_smallest(scores_flat, k):
    """Exact k-th smallest f32 value using 32 compare+count passes.

    Maps f32 bit patterns to a monotone uint32 key, binary-searches for the
    smallest key t with count(key <= t) >= k (which is the k-th smallest key),
    then maps back to f32. O(32*N) compares instead of an O(N log N) sort.
    """
    x = scores_flat.astype(jnp.float32)
    u = jax.lax.bitcast_convert_type(x, jnp.uint32)
    sign = (u & jnp.uint32(0x80000000)) != jnp.uint32(0)
    # Monotone total-order key: negatives -> ~u, non-negatives -> u | 0x80000000.
    key = jnp.where(sign, ~u, u | jnp.uint32(0x80000000))

    def body(_, carry):
        lo, hi = carry
        mid = lo + (hi - lo) // jnp.uint32(2)
        cnt = jnp.sum((key <= mid).astype(jnp.int32))
        ge = cnt >= k
        lo = jnp.where(ge, lo, mid + jnp.uint32(1))
        hi = jnp.where(ge, mid, hi)
        return lo, hi

    lo, _ = jax.lax.fori_loop(
        0, 32, body, (jnp.uint32(0), jnp.uint32(0xFFFFFFFF)))

    came_from_negative = (lo & jnp.uint32(0x80000000)) == jnp.uint32(0)
    bits = jnp.where(came_from_negative, ~lo, lo & jnp.uint32(0x7FFFFFFF))
    return jax.lax.bitcast_convert_type(bits, jnp.float32)


# ---------------------------------------------------------------------------
# Pallas kernels: tiled matmul + bias, accumulator pattern over the K axis.
# ---------------------------------------------------------------------------
def _matmul_bias_kernel_f32(x_ref, w_ref, b_ref, o_ref):
    # x_ref: [tm, tk], w_ref: [tk, tn] (pruned weight, pre-transposed),
    # b_ref: [1, tn] f32, o_ref: [tm, tn] f32 (resident accumulator across k).
    part = jnp.dot(x_ref[...], w_ref[...], preferred_element_type=jnp.float32)

    @pl.when(pl.program_id(2) == 0)
    def _():
        # Bias folded into the first partial sum: no zero-fill, no epilogue add.
        o_ref[...] = b_ref[...] + part

    @pl.when(pl.program_id(2) > 0)
    def _():
        o_ref[...] += part


def _matmul_bias_kernel_acc(x_ref, w_ref, b_ref, o_ref, acc_ref):
    # Variant with f32 scratch accumulator for non-f32 output dtypes.
    part = jnp.dot(x_ref[...], w_ref[...], preferred_element_type=jnp.float32)

    @pl.when(pl.program_id(2) == 0)
    def _():
        acc_ref[...] = b_ref[...] + part

    @pl.when(pl.program_id(2) > 0)
    def _():
        acc_ref[...] += part

    @pl.when(pl.program_id(2) == pl.num_programs(2) - 1)
    def _():
        o_ref[...] = acc_ref[...].astype(o_ref.dtype)


# ---------------------------------------------------------------------------
# One-time parameter preparation (hoisted out of the per-forward path).
# ---------------------------------------------------------------------------
def prepare_sparse_linear_params(weight, weight_score, bias, sparsity,
                                 *, tn=512, tk=1024, compute_dtype=None):
    """Threshold, prune, transpose and pad the weight ONCE.

    In a real model this runs when parameters change (once per optimizer step),
    not on every forward call.
    """
    out_ch, in_ch = weight.shape

    # percentile(): k = 1 + round(0.01 * q * (numel - 1)), q = sparsity * 100
    numel = weight_score.size
    k = 1 + round(0.01 * float(sparsity * 100.0) * (numel - 1))
    kval = _kth_smallest(weight_score.reshape(-1), k)

    # Prune once (threshold compare kept in f32; ties: score >= kval keeps weight,
    # matching the reference's `score < kval -> 0`).
    w_pruned = jnp.where(weight_score.astype(jnp.float32) >= kval,
                         weight.astype(jnp.float32), 0.0)

    if bias is None:
        bias = jnp.zeros((out_ch,), dtype=jnp.float32)

    # Lane-dense, (8,128)-aligned tiles capped to the (padded) problem size.
    tn = min(tn, _round_up(out_ch, 128))
    tk = min(tk, _round_up(in_ch, 128))
    Np = _round_up(out_ch, tn)
    Kp = _round_up(in_ch, tk)

    # Pre-transposed [K, N] pruned weight; zero padding contributes nothing.
    wt = jnp.pad(w_pruned.T, ((0, Kp - in_ch), (0, Np - out_ch)))
    bp = jnp.pad(bias.astype(jnp.float32).reshape(1, out_ch),
                 ((0, 0), (0, Np - out_ch)))

    if compute_dtype is not None:
        # TODO(synk): bf16 MXU-feed path; keeps f32 accumulation but relaxes parity.
        wt = wt.astype(compute_dtype)

    return {
        "w": wt, "b": bp,
        "in_ch": in_ch, "out_ch": out_ch,
        "tn": tn, "tk": tk, "Np": Np, "Kp": Kp,
        "compute_dtype": compute_dtype,
    }


# ---------------------------------------------------------------------------
# Forward (per-call part): pad x, run the tiled matmul kernel.
# ---------------------------------------------------------------------------
def sparse_linear_apply(x, params, *, tm=256):
    in_ch = params["in_ch"]
    out_ch = params["out_ch"]
    tn, tk = params["tn"], params["tk"]
    Np, Kp = params["Np"], params["Kp"]
    wt, bp = params["w"], params["b"]
    compute_dtype = params["compute_dtype"]

    orig_lead = x.shape[:-1]
    x2d = x.reshape(-1, in_ch)
    M = x2d.shape[0]

    tm = min(tm, _round_up(M, 8))
    Mp = _round_up(M, tm)

    xp = jnp.pad(x2d, ((0, Mp - M), (0, Kp - in_ch)))
    if compute_dtype is not None:
        xp = xp.astype(compute_dtype)

    out_dtype = x.dtype
    grid = (Mp // tm, Np // tn, Kp // tk)

    if out_dtype == jnp.float32:
        kernel = _matmul_bias_kernel_f32
        scratch_shapes = []
        acc_bytes = 0
    else:
        kernel = _matmul_bias_kernel_acc
        scratch_shapes = [pltpu.VMEM((tm, tn), jnp.float32)]
        acc_bytes = tm * tn * 4

    # VMEM footprint of the double-buffered schedule; raise the scoped limit only
    # as far as the tiles need (keeps us within v7x's 64 MiB physical VMEM).
    x_itm = jnp.dtype(xp.dtype).itemsize
    w_itm = jnp.dtype(wt.dtype).itemsize
    o_itm = jnp.dtype(out_dtype).itemsize
    tile_bytes = (2 * (tm * tk * x_itm + tk * tn * w_itm + tn * 4)
                  + 2 * tm * tn * o_itm + acc_bytes)
    vmem_limit = int(min(max(tile_bytes + (4 << 20), 32 << 20), 96 << 20))

    # Bytes actually moved: w re-streamed once per M block, x once per N block.
    cost = pl.CostEstimate(
        flops=2 * Mp * Np * Kp,
        transcendentals=0,
        bytes_accessed=(xp.size * x_itm * (Np // tn)
                        + wt.size * w_itm * (Mp // tm)
                        + bp.size * 4 * (Mp // tm)
                        + Mp * Np * o_itm),
    )

    out_padded = pl.pallas_call(
        kernel,
        out_shape=jax.ShapeDtypeStruct((Mp, Np), out_dtype),
        grid_spec=pltpu.PrefetchScalarGridSpec(
            num_scalar_prefetch=0,
            grid=grid,
            in_specs=[
                pl.BlockSpec((tm, tk), lambda i, j, k: (i, k)),   # x
                pl.BlockSpec((tk, tn), lambda i, j, k: (k, j)),   # pruned weight.T
                pl.BlockSpec((1, tn), lambda i, j, k: (0, j)),    # bias
            ],
            out_specs=pl.BlockSpec((tm, tn), lambda i, j, k: (i, j)),
            scratch_shapes=scratch_shapes,
        ),
        compiler_params=pltpu.CompilerParams(
            dimension_semantics=("parallel", "parallel", "arbitrary"),
            vmem_limit_bytes=vmem_limit,
        ),
        cost_estimate=cost,
    )(xp, wt, bp)

    out2d = out_padded[:M, :out_ch]
    return out2d.reshape(orig_lead + (out_ch,))


def sparse_linear_forward(x, weight, weight_score, bias, sparsity,
                          *, tm=256, tn=512, tk=1024, compute_dtype=None):
    """Convenience one-shot wrapper (prepare + apply)."""
    params = prepare_sparse_linear_params(weight, weight_score, bias, sparsity,
                                          tn=tn, tk=tk, compute_dtype=compute_dtype)
    return sparse_linear_apply(x, params, tm=tm)


def _kaiming_uniform(key, shape, scale):
    # nn.init.kaiming_uniform_(mode='fan_in', nonlinearity='relu'), then *= scale
    fan_in = shape[1]
    bound = math.sqrt(6.0 / fan_in)  # gain(relu)=sqrt(2), bound = sqrt(3)*gain/sqrt(fan_in)
    return jax.random.uniform(key, shape, jnp.float32, -bound, bound) * scale


if __name__ == "__main__":
    # cfg equivalent: linear_sparsity=0.5, init_mode='kaiming_uniform',
    # init_mode_mask='kaiming_uniform', init_scale=1.0, init_scale_score=1.0
    sparsity = 0.5
    init_scale = 1.0
    init_scale_score = 1.0

    batch, in_ch, out_ch = 2, 32, 16

    key = jax.random.PRNGKey(0)
    k_x, k_w, k_s = jax.random.split(key, 3)

    x = jax.random.normal(k_x, (batch, in_ch), dtype=jnp.float32)
    weight = _kaiming_uniform(k_w, (out_ch, in_ch), init_scale)
    weight_score = _kaiming_uniform(k_s, (out_ch, in_ch), init_scale_score)
    bias = jnp.zeros((out_ch,), dtype=jnp.float32)  # nn.Parameter(torch.zeros(out_ch))

    # Prepare once (prune/transpose/pad hoisted out of the forward path), then apply.
    params = prepare_sparse_linear_params(weight, weight_score, bias, sparsity)
    out = sparse_linear_apply(x, params)
    out = jax.block_until_ready(out)

    # Pure-JAX reference (sort-based threshold) for sanity checking.
    numel = weight_score.size
    k = 1 + round(0.01 * float(sparsity * 100.0) * (numel - 1))
    kval_ref = jnp.sort(weight_score.reshape(-1))[k - 1]
    subnet = jnp.where(weight_score < kval_ref, 0.0, 1.0)
    ref = x @ (weight * subnet).T + bias[None, :]

    assert out.shape == (batch, out_ch)
    assert jnp.allclose(out, ref, atol=1e-5, rtol=1e-5)
    print("KERNEL_OK")
</pallas_src>

<mosaic_0001>
module attributes {stable_mosaic.version = 11 : i64} {
  func.func @_matmul_bias_kernel_f32(%arg0: i32, %arg1: i32, %arg2: i32, %arg3: memref<8x128xf32, #tpu.memory_space<vmem>>, %arg4: memref<128x128xf32, #tpu.memory_space<vmem>>, %arg5: memref<1x128xf32, #tpu.memory_space<vmem>>, %arg6: memref<8x128xf32, #tpu.memory_space<vmem>>) attributes {dimension_semantics = [#tpu.dimension_semantics<parallel>, #tpu.dimension_semantics<parallel>, #tpu.dimension_semantics<arbitrary>], iteration_bounds = array<i64: 1, 1, 1>, scalar_prefetch = 0 : i64, scratch_operands = 0 : i64, tpu.core_type = #tpu.core_type<tc>, window_params = [{transform_indices = @transform_0, window_bounds = array<i64: 8, 128>}, {transform_indices = @transform_1, window_bounds = array<i64: 128, 128>}, {transform_indices = @transform_2, window_bounds = array<i64: 1, 128>}, {transform_indices = @transform_3, window_bounds = array<i64: 8, 128>}]} {
    %c0 = arith.constant 0 : index
    %c0_0 = arith.constant 0 : index
    %0 = vector.load %arg3[%c0, %c0_0] : memref<8x128xf32, #tpu.memory_space<vmem>>, vector<8x128xf32>
    %c0_1 = arith.constant 0 : index
    %c0_2 = arith.constant 0 : index
    %1 = vector.load %arg4[%c0_1, %c0_2] : memref<128x128xf32, #tpu.memory_space<vmem>>, vector<128x128xf32>
    %cst = arith.constant dense<0.000000e+00> : vector<8x128xf32>
    %2 = tpu.matmul %0, %1, %cst {dimension_numbers = #tpu.dot_dimension_numbers<[1], [0], [0], [1], [0, 0, 1, 1], [], []>} : vector<8x128xf32>, vector<128x128xf32>, vector<8x128xf32> -> vector<8x128xf32>
    %c0_i32 = arith.constant 0 : i32
    %3 = arith.cmpi eq, %arg2, %c0_i32 : i32
    %4 = arith.extui %3 : i1 to i32
    %c0_i32_3 = arith.constant 0 : i32
    %5 = arith.cmpi ne, %4, %c0_i32_3 : i32
    scf.if %5 {
      %c0_6 = arith.constant 0 : index
      %c0_7 = arith.constant 0 : index
      %9 = vector.load %arg5[%c0_6, %c0_7] : memref<1x128xf32, #tpu.memory_space<vmem>>, vector<1x128xf32>
      %10 = vector.broadcast %9 : vector<1x128xf32> to vector<8x128xf32>
      %11 = arith.addf %10, %2 : vector<8x128xf32>
      %c0_8 = arith.constant 0 : index
      %c0_9 = arith.constant 0 : index
      %12 = vector.load %arg6[%c0_8, %c0_9] : memref<8x128xf32, #tpu.memory_space<vmem>>, vector<8x128xf32>
      tpu.vector_store %arg6[%c0_8, %c0_9], %11 {strides = array<i32>} : memref<8x128xf32, #tpu.memory_space<vmem>>, vector<8x128xf32>,
    } else {
    }
    %c0_i32_4 = arith.constant 0 : i32
    %6 = arith.cmpi sgt, %arg2, %c0_i32_4 : i32
    %7 = arith.extui %6 : i1 to i32
    %c0_i32_5 = arith.constant 0 : i32
    %8 = arith.cmpi ne, %7, %c0_i32_5 : i32
    scf.if %8 {
      %c0_6 = arith.constant 0 : index
      %c0_7 = arith.constant 0 : index
      %9 = vector.load %arg6[%c0_6, %c0_7] : memref<8x128xf32, #tpu.memory_space<vmem>>, vector<8x128xf32>
      %10 = arith.addf %9, %2 : vector<8x128xf32>
      %c0_8 = arith.constant 0 : index
      %c0_9 = arith.constant 0 : index
      %11 = vector.load %arg6[%c0_8, %c0_9] : memref<8x128xf32, #tpu.memory_space<vmem>>, vector<8x128xf32>
      tpu.vector_store %arg6[%c0_8, %c0_9], %10 {strides = array<i32>} : memref<8x128xf32, #tpu.memory_space<vmem>>, vector<8x128xf32>,
    } else {
    }
    return
  }
  func.func @transform_0(%arg0: i32, %arg1: i32, %arg2: i32) -> (i32, i32) {
    %c0_i32 = arith.constant 0 : i32
    return %arg0, %arg2 : i32, i32
  }
  func.func @transform_1(%arg0: i32, %arg1: i32, %arg2: i32) -> (i32, i32) {
    %c0_i32 = arith.constant 0 : i32
    return %arg2, %arg1 : i32, i32
  }
  func.func @transform_2(%arg0: i32, %arg1: i32, %arg2: i32) -> (i32, i32) {
    %c0_i32 = arith.constant 0 : i32
    %c0_i32_0 = arith.constant 0 : i32
    return %c0_i32, %arg1 : i32, i32
  }
  func.func @transform_3(%arg0: i32, %arg1: i32, %arg2: i32) -> (i32, i32) {
    %c0_i32 = arith.constant 0 : i32
    return %arg0, %arg1 : i32, i32
  }
}

</mosaic_0001>

<llo_original>
// kernel: tpu_custom_call.1
$region0: #{tpu_custom_call.1}
  #allocation0 [shape = 'u32[]', space=smem, size = 0x4, offset = 0x4, fixed_abs, tag = 'smem constant byte address 0x4 - core index']
  #allocation1 [shape = 'u32[72,128]{1,0:T(1,128)}', space=vmem, size = 0x9000, scoped, tag = 'internal scratch']
  %s0 = inlined_call_operand.hbm [shape: f32[8,128], index: 0, kind: input, shape index: {}]
  %s1 = inlined_call_operand.hbm [shape: f32[128,128], index: 1, kind: input, shape index: {}]
  %s2 = inlined_call_operand.vmem [shape: f32[1,128], index: 2, kind: input, shape index: {}]
  %s3 = inlined_call_operand.hbm [shape: f32[8,128], index: 3, kind: output, shape index: {}]
  %s4 = sld [smem:[#allocation0]]
  $region38: #{tpu_custom_call.1} parent=0
    _
  %s6 = ssub.s32 1, %s4
  %s7 = scalar_select 0, %s6, %s4
  $region1: #{tpu_custom_call.1} parent=0
    #allocation2 [shape = 'u8[4096]{0}', space=vmem, size = 0x1000, scoped, tag = 'input window, operand 0, single buffered']
    #allocation3 [shape = 's32[1]{0}', space=sflag, size = 0x4, scoped, tag = 'scoped memory for tpu_custom_call.1']
    #allocation4 [shape = 's32[1]{0}', space=sflag, size = 0x4, scoped, tag = 'scoped memory for tpu_custom_call.1']
    #allocation5 [shape = 'u8[65536]{0}', space=vmem, size = 0x10000, scoped, tag = 'input window, operand 1, single buffered']
    #allocation6 [shape = 's32[1]{0}', space=sflag, size = 0x4, scoped, tag = 'scoped memory for tpu_custom_call.1']
    #allocation7 [shape = 'u8[4096]{0}', space=vmem, size = 0x1000, scoped, tag = 'output window, operand 0, single buffered']
    %8 = vsyncpa [#allocation3], 0
    %9 = vsyncpa [#allocation6], 0
    %10 = vsyncpa [#allocation4], 0
    // Predicated region
    $region2: #{tpu_custom_call.1} parent=1 // pred_check
      _
    $region3: #{tpu_custom_call.1} parent=1 // pred_check_branch
      %12 = sbr.rel (0) target = $region5
    $region4: #{tpu_custom_call.1} parent=1 // pred_region
      %14 = vsyncadd [#allocation3], 0
      %s16 = sshll.u32 %s0, 4
      %s17 = int_to_ptr.hbm [resolvable:$true] %s16
      %s18 = sshll.u32 [#allocation2], 4
      %s19 = int_to_ptr.vmem [resolvable:$true] %s18
      %21 = dma.hbm_to_vmem [thread:$0]  %s17, 128, %s19, [#allocation3]
    $region5: #{tpu_custom_call.1} parent=1 // pred_fallthru
      _
    // Predicated region
    $region6: #{tpu_custom_call.1} parent=1 // pred_check
      _
    $region7: #{tpu_custom_call.1} parent=1 // pred_check_branch
      %23 = sbr.rel (0) target = $region9
    $region8: #{tpu_custom_call.1} parent=1 // pred_region
      %25 = vsyncadd [#allocation6], 0
      %s26 = sshll.u32 %s1, 4
      %s27 = int_to_ptr.hbm [resolvable:$true] %s26
      %s28 = sshll.u32 [#allocation5], 4
      %s29 = int_to_ptr.vmem [resolvable:$true] %s28
      %34 = dma.hbm_to_vmem [thread:$0]  %s27, 2048, %s29, [#allocation6], 128, 128, 8
    $region9: #{tpu_custom_call.1} parent=1 // pred_fallthru
      _
    // Predicated region
    $region10: #{tpu_custom_call.1} parent=1 // pred_check
      _
    $region11: #{tpu_custom_call.1} parent=1 // pred_check_branch
      %36 = sbr.rel (0) target = $region13
    $region12: #{tpu_custom_call.1} parent=1 // pred_region
      _
    $region13: #{tpu_custom_call.1} parent=1 // pred_fallthru
      _
    // Predicated region
    $region14: #{tpu_custom_call.1} parent=1 // pred_check
      _
    $region15: #{tpu_custom_call.1} parent=1 // pred_check_branch
      %38 = sbr.rel (0) target = $region17
    $region16: #{tpu_custom_call.1} parent=1 // pred_region
      %40 = dma.done [#allocation3], 128
    $region17: #{tpu_custom_call.1} parent=1 // pred_fallthru
      _
    // Predicated region
    $region18: #{tpu_custom_call.1} parent=1 // pred_check
      _
    $region19: #{tpu_custom_call.1} parent=1 // pred_check_branch
      %42 = sbr.rel (0) target = $region21
    $region20: #{tpu_custom_call.1} parent=1 // pred_region
      %44 = dma.done [#allocation6], 2048
    $region21: #{tpu_custom_call.1} parent=1 // pred_fallthru
      _
    %v45 = vld [vmem:[#allocation2] sm:$0xff]
    %v46 = vld [vmem:[#allocation5] sm:$0xff]
    %v47 = vld [vmem:[#allocation5 + $0x8] sm:$0xff]
    %v48 = vld [vmem:[#allocation5 + $0x10] sm:$0xff]
    %v49 = vld [vmem:[#allocation5 + $0x18] sm:$0xff]
    %v50 = vld [vmem:[#allocation5 + $0x20] sm:$0xff]
    %v51 = vld [vmem:[#allocation5 + $0x28] sm:$0xff]
    %v52 = vld [vmem:[#allocation5 + $0x30] sm:$0xff]
    %v53 = vld [vmem:[#allocation5 + $0x38] sm:$0xff]
    %v54 = vld [vmem:[#allocation5 + $0x40] sm:$0xff]
    %v55 = vld [vmem:[#allocation5 + $0x48] sm:$0xff]
    %v56 = vld [vmem:[#allocation5 + $0x50] sm:$0xff]
    %v57 = vld [vmem:[#allocation5 + $0x58] sm:$0xff]
    %v58 = vld [vmem:[#allocation5 + $0x60] sm:$0xff]
    %v59 = vld [vmem:[#allocation5 + $0x68] sm:$0xff]
    %v60 = vld [vmem:[#allocation5 + $0x70] sm:$0xff]
    %v61 = vld [vmem:[#allocation5 + $0x78] sm:$0xff]
    %62 = vmatpush.msra.mxu0 %v61
    %63 = vmatpush.msra.mxu0 %v60
    %64 = vmatpush.msra.mxu0 %v59
    %65 = vmatpush.msra.mxu0 %v58
    %66 = vmatpush.msra.mxu0 %v57
    %67 = vmatpush.msra.mxu0 %v56
    %68 = vmatpush.msra.mxu0 %v55
    %69 = vmatpush.msra.mxu0 %v54
    %70 = vmatpush.msra.mxu0 %v53
    %71 = vmatpush.msra.mxu0 %v52
    %72 = vmatpush.msra.mxu0 %v51
    %73 = vmatpush.msra.mxu0 %v50
    %74 = vmatpush.msra.mxu0 %v49
    %75 = vmatpush.msra.mxu0 %v48
    %76 = vmatpush.msra.mxu0 %v47
    %77 = vmatpush.msra.mxu0 %v46
    %78 = vmatmul.f32.gmra.mxu0 %v45
    %v79 = vpop.f32.mrf.mxu0
    %v80 = vadd.f32 0.0, %v79
    %81 = vdwg.mxu0
    %p82 = scmp.eq.s32.totalorder 0, 0
    // Predicated region
    $region22: #{tpu_custom_call.1} parent=1 // pred_check
      %p83 = pneg %p82
    $region23: #{tpu_custom_call.1} parent=1 // pred_check_branch
      %85 = sbr.rel (%p83) target = $region25
    $region24: #{tpu_custom_call.1} parent=1 // pred_region
      %v86 = vld [vmem:[%s2] sm:$0x1]
      %v88 = vperm.slane %v86, 0
      %v90 = vadd.f32 %v88, %v80
      %91 = vst [vmem:[#allocation7] sm:$0xff] %v90
    $region25: #{tpu_custom_call.1} parent=1 // pred_fallthru
      _
    %p92 = scmp.gt.s32.totalorder 0, 0
    // Predicated region
    $region26: #{tpu_custom_call.1} parent=1 // pred_check
      %p93 = pneg %p92
    $region27: #{tpu_custom_call.1} parent=1 // pred_check_branch
      %95 = sbr.rel (%p93) target = $region29
    $region28: #{tpu_custom_call.1} parent=1 // pred_region
      %v96 = vld [vmem:[#allocation7] sm:$0xff]
      %v97 = vadd.f32 %v96, %v80
      %98 = vst [vmem:[#allocation7] sm:$0xff] %v97
    $region29: #{tpu_custom_call.1} parent=1 // pred_fallthru
      _
    // Predicated region
    $region30: #{tpu_custom_call.1} parent=1 // pred_check
      _
    $region31: #{tpu_custom_call.1} parent=1 // pred_check_branch
      %100 = sbr.rel (0) target = $region33
    $region32: #{tpu_custom_call.1} parent=1 // pred_region
      %102 = vsyncadd [#allocation4], 0
      %s104 = sshll.u32 [#allocation7], 4
      %s105 = int_to_ptr.vmem [resolvable:$true] %s104
      %s106 = sshll.u32 %s3, 4
      %s107 = int_to_ptr.hbm [resolvable:$true] %s106
      %109 = dma.vmem_to_hbm [thread:$0]  %s105, 128, %s107, [#allocation4]
    $region33: #{tpu_custom_call.1} parent=1 // pred_fallthru
      _
    // Predicated region
    $region34: #{tpu_custom_call.1} parent=1 // pred_check
      _
    $region35: #{tpu_custom_call.1} parent=1 // pred_check_branch
      %111 = sbr.rel (0) target = $region37
    $region36: #{tpu_custom_call.1} parent=1 // pred_region
      %113 = dma.done [#allocation4], 128
    $region37: #{tpu_custom_call.1} parent=1 // pred_fallthru
      _
    %114 = vsyncpa [#allocation3], 1
    %115 = vsyncpa [#allocation6], 1
    %116 = vsyncpa [#allocation4], 1

</llo_original>
